<compile_context>
chip_gen: v7x
topology: tpu7x:2x2x1
jax: 0.10.0
libtpu: 0.0.40
codegen_flags: <defaults>
</compile_context>

<pallas_src>
import jax
import jax.numpy as jnp
from jax import lax
from jax.experimental import pallas as pl
from jax.experimental.pallas import tpu as pltpu


def _round_up(x: int, m: int) -> int:
    return ((x + m - 1) // m) * m


def _sublane_multiple(dtype) -> int:
    return {4: 8, 2: 16, 1: 32}.get(jnp.dtype(dtype).itemsize, 8)


def _kl_ref(out_exp: jax.Array, true_exp: jax.Array) -> jax.Array:
    """Pure-JAX reference: KLDivLoss(log_target=False, reduction='batchmean')."""
    x = out_exp.astype(jnp.float32)
    t = true_exp.astype(jnp.float32)
    safe_t = jnp.where(t > 0, t, 1.0)
    pw = t * (jnp.log(safe_t) - x)
    return jnp.sum(pw) / jnp.float32(out_exp.shape[0])


def _make_kl_kernel(bm, bc, B, C, rows_per_part, cols_per_part,
                    split_cols, mask_rows, mask_cols):
    """Kernel: accumulate the KL pointwise sum into a lane-wide (1, 8, bc) block."""

    def kernel(logp_ref, tgt_ref, out_ref):
        p = pl.program_id(0)   # parallel axis (per-core partial on v7x)
        r = pl.program_id(1)   # row-block index   (reduction, "arbitrary")
        c = pl.program_id(2)   # class-block index (reduction, "arbitrary")

        @pl.when((r == 0) & (c == 0))
        def _():
            out_ref[...] = jnp.zeros_like(out_ref)

        x = logp_ref[...].astype(jnp.float32)   # log-probabilities (input)
        t = tgt_ref[...].astype(jnp.float32)    # probabilities (target)

        if mask_rows or mask_cols:
            # Global (unclamped) block indices — also zeroes duplicated blocks
            # that the index_map clamped back in range for an uneven split.
            if split_cols:
                row_block = r
                col_block = p * cols_per_part + c
            else:
                row_block = p * rows_per_part + r
                col_block = c
            valid = None
            if mask_rows:
                rid = lax.broadcasted_iota(jnp.int32, (bm, bc), 0)
                valid = (row_block * bm + rid) < B
            if mask_cols:
                cid = lax.broadcasted_iota(jnp.int32, (bm, bc), 1)
                vc = (col_block * bc + cid) < C
                valid = vc if valid is None else (valid & vc)
            # Select (not multiply) so garbage NaN/Inf in the ragged region of
            # the VMEM buffer cannot propagate.
            t = jnp.where(valid, t, 0.0)
            x = jnp.where(valid, x, 0.0)

        # Pointwise KL term (log_target=False): t * (log(t) - x), zero at t==0.
        safe_t = jnp.where(t > 0, t, 1.0)
        pointwise = t * (jnp.log(safe_t) - x)

        # (bm, bc) -> (bm//8, 8, bc) splits the leading dim (layout-preserving);
        # summing axis 0 is pure sublane-group VPU work, keeping the accumulator
        # lane-resident.  (If a bundle dump ever shows a materialized copy here,
        # replace with an explicit slab loop over static 8-row slices.)
        partial = jnp.sum(pointwise.reshape(bm // 8, 8, bc), axis=0)   # (8, bc)
        out_ref[...] += partial[None, :, :]

    return kernel


def kl_div_batchmean_pallas(out_exp: jax.Array, true_exp: jax.Array,
                            *, block_rows: int | None = None,
                            block_cols: int | None = None,
                            use_fast_path: bool = True) -> jax.Array:
    """KLDivLoss(log_target=False, reduction='batchmean') via a Pallas kernel."""
    assert out_exp.shape == true_exp.shape and out_exp.ndim == 2
    B, C = out_exp.shape
    itemsize = max(jnp.dtype(out_exp.dtype).itemsize,
                   jnp.dtype(true_exp.dtype).itemsize)

    # Tiny problems: grid/pipeline warm-up dominates; a fused XLA reduction wins.
    if use_fast_path and B * C * itemsize < (2 << 20):
        return _kl_ref(out_exp, true_exp)

    sub = max(_sublane_multiple(out_exp.dtype), _sublane_multiple(true_exp.dtype))

    # ---- tile selection ------------------------------------------------------
    if block_cols is not None:
        bc = block_cols
    elif C <= 2048:
        bc = _round_up(C, 128)
    else:  # balance column blocks so the ragged last block wastes < 128 lanes
        n_cb = -(-C // 2048)
        bc = _round_up(-(-C // n_cb), 128)

    if block_rows is not None:
        bm = block_rows
    elif B <= 512:
        bm = _round_up(B, sub)
    else:
        n_rb = -(-B // 512)
        bm = _round_up(-(-B // n_rb), sub)

    assert bc % 128 == 0, "block_cols must be a multiple of 128"
    assert bm % sub == 0, (
        f"block_rows must be a multiple of {sub} for itemsize={itemsize}")

    # Keep 2 inputs x 2 pipeline buffers under ~24 MiB (dtype-aware); the
    # explicit vmem_limit_bytes below leaves headroom for the accumulator and
    # compiler scratch on every generation (incl. v7x's 64 MiB physical VMEM).
    budget = 24 << 20
    while bm * bc * 2 * 2 * itemsize > budget and bm > sub:
        bm = max(sub, bm // 2)

    # ---- grid / megacore split ----------------------------------------------
    row_blocks = pl.cdiv(B, bm)
    col_blocks = pl.cdiv(C, bc)

    split_cols = False
    num_parts = 1
    if row_blocks >= 2:
        num_parts = 2                       # split rows across TCs (v7x)
    elif col_blocks >= 2:
        num_parts = 2                       # short-and-wide: split columns
        split_cols = True

    if split_cols:
        rows_per_part = row_blocks
        cols_per_part = -(-col_blocks // num_parts)
    else:
        rows_per_part = -(-row_blocks // num_parts)
        cols_per_part = col_blocks

    total_row_blocks = rows_per_part * (1 if split_cols else num_parts)
    total_col_blocks = cols_per_part * (num_parts if split_cols else 1)
    mask_rows = total_row_blocks * bm > B
    mask_cols = total_col_blocks * bc > C
    clamp_rows = total_row_blocks > row_blocks   # uneven row split
    clamp_cols = total_col_blocks > col_blocks   # uneven column split

    RP, CP = rows_per_part, cols_per_part
    if split_cols:
        if clamp_cols:
            def in_map(p, r, c):
                return (r, jnp.minimum(p * CP + c, col_blocks - 1))
        else:
            def in_map(p, r, c):
                return (r, p * CP + c)
    else:
        if clamp_rows:
            def in_map(p, r, c):
                return (jnp.minimum(p * RP + r, row_blocks - 1), c)
        else:
            def in_map(p, r, c):
                return (p * RP + r, c)

    grid = (num_parts, rows_per_part, cols_per_part)
    kernel = _make_kl_kernel(bm, bc, B, C, RP, CP, split_cols, mask_rows, mask_cols)

    partials = pl.pallas_call(
        kernel,
        out_shape=jax.ShapeDtypeStruct((num_parts, 8, bc), jnp.float32),
        grid_spec=pltpu.PrefetchScalarGridSpec(
            num_scalar_prefetch=0,
            grid=grid,
            in_specs=[
                pl.BlockSpec((bm, bc), in_map),
                pl.BlockSpec((bm, bc), in_map),
            ],
            # Output block depends only on the parallel axis -> it stays
            # VMEM-resident across both "arbitrary" reduction axes and acts as
            # a lane-wide accumulator (one partial per core on v7x).
            out_specs=pl.BlockSpec((1, 8, bc), lambda p, r, c: (p, 0, 0)),
        ),
        compiler_params=pltpu.CompilerParams(
            dimension_semantics=("parallel", "arbitrary", "arbitrary"),
            vmem_limit_bytes=48 << 20),
    )(out_exp, true_exp)

    # Single tiny cross-lane reduction + 'batchmean' scale, once, outside the
    # streaming loop.
    return jnp.sum(partials) / jnp.float32(B)


class MyLossPallas:
    """JAX/Pallas port of MyLoss. lambda_1 / weight_label / x_edge are unused
    by the original forward, so they are kept only for signature parity."""

    def __init__(self, lambda_1: float, weight_label: jax.Array,
                 use_fast_path: bool = True):
        self.lambda_1 = lambda_1
        self.weight_label = weight_label
        self.use_fast_path = use_fast_path

    def __call__(self, out_exp, true_exp, x_edge):
        return kl_div_batchmean_pallas(out_exp, true_exp,
                                       use_fast_path=self.use_fast_path)


if __name__ == "__main__":
    key = jax.random.PRNGKey(0)
    ks = jax.random.split(key, 10)

    # --- case 1: ragged C, single part (exercises in-kernel column masking) --
    B, C = 8, 200  # deliberately not multiples of (8, 128)
    out_exp = jax.nn.log_softmax(jax.random.normal(ks[0], (B, C), jnp.float32), -1)
    true_exp = jax.nn.softmax(jax.random.normal(ks[1], (B, C), jnp.float32), -1)
    x_edge = jax.random.normal(ks[2], (B, 16), jnp.float32)   # unused by forward

    weight_label = jax.random.uniform(ks[3], (C,), jnp.float32)
    loss_mod = MyLossPallas(lambda_1=0.5, weight_label=weight_label,
                            use_fast_path=False)   # force the Pallas path
    loss1 = jax.block_until_ready(loss_mod(out_exp, true_exp, x_edge))
    ref1 = _kl_ref(out_exp, true_exp)
    assert jnp.allclose(loss1, ref1, rtol=1e-5, atol=1e-6), (loss1, ref1)

    # --- case 2: forced small tiles -> uneven row split + row & col masking --
    B2, C2 = 40, 300
    out2 = jax.nn.log_softmax(jax.random.normal(ks[4], (B2, C2), jnp.float32), -1)
    tgt2 = jax.nn.softmax(jax.random.normal(ks[5], (B2, C2), jnp.float32), -1)
    loss2 = jax.block_until_ready(kl_div_batchmean_pallas(
        out2, tgt2, block_rows=16, block_cols=128, use_fast_path=False))
    ref2 = _kl_ref(out2, tgt2)
    assert jnp.allclose(loss2, ref2, rtol=1e-5, atol=1e-6), (loss2, ref2)

    # --- case 3: short-and-wide -> parallel axis on columns (v7x megacore) ---
    B3, C3 = 8, 1024
    out3 = jax.nn.log_softmax(jax.random.normal(ks[6], (B3, C3), jnp.float32), -1)
    tgt3 = jax.nn.softmax(jax.random.normal(ks[7], (B3, C3), jnp.float32), -1)
    loss3 = jax.block_until_ready(kl_div_batchmean_pallas(
        out3, tgt3, block_cols=256, use_fast_path=False))
    ref3 = _kl_ref(out3, tgt3)
    assert jnp.allclose(loss3, ref3, rtol=1e-5, atol=1e-6), (loss3, ref3)

    # --- case 4: bf16 inputs (sublane-16 tiling, f32 accumulation) -----------
    B4, C4 = 48, 384
    out4 = jax.nn.log_softmax(
        jax.random.normal(ks[8], (B4, C4), jnp.float32), -1).astype(jnp.bfloat16)
    tgt4 = jax.nn.softmax(
        jax.random.normal(ks[9], (B4, C4), jnp.float32), -1).astype(jnp.bfloat16)
    loss4 = jax.block_until_ready(
        kl_div_batchmean_pallas(out4, tgt4, use_fast_path=False))
    ref4 = _kl_ref(out4, tgt4)
    assert jnp.allclose(loss4, ref4, rtol=1e-4, atol=1e-5), (loss4, ref4)

    # --- case 5: tiny-input fast path through the module wrapper -------------
    loss5 = jax.block_until_ready(
        MyLossPallas(0.5, weight_label)(out_exp, true_exp, x_edge))
    assert jnp.allclose(loss5, ref1, rtol=1e-5, atol=1e-6), (loss5, ref1)

    print("KERNEL_OK")
</pallas_src>

<mosaic_0001>
module attributes {stable_mosaic.version = 11 : i64} {
  func.func @kernel(%arg0: i32, %arg1: i32, %arg2: i32, %arg3: memref<8x256xf32, #tpu.memory_space<vmem>>, %arg4: memref<8x256xf32, #tpu.memory_space<vmem>>, %arg5: memref<1x8x256xf32, #tpu.memory_space<vmem>>) attributes {dimension_semantics = [#tpu.dimension_semantics<parallel>, #tpu.dimension_semantics<arbitrary>, #tpu.dimension_semantics<arbitrary>], iteration_bounds = array<i64: 1, 1, 1>, scalar_prefetch = 0 : i64, scratch_operands = 0 : i64, tpu.core_type = #tpu.core_type<tc>, window_params = [{transform_indices = @transform_0, window_bounds = array<i64: 8, 256>}, {transform_indices = @transform_1, window_bounds = array<i64: 8, 256>}, {transform_indices = @transform_2, window_bounds = array<i64: 1, 8, 256>}]} {
    %c0_i32 = arith.constant 0 : i32
    %0 = arith.cmpi eq, %arg1, %c0_i32 : i32
    %c0_i32_0 = arith.constant 0 : i32
    %1 = arith.cmpi eq, %arg2, %c0_i32_0 : i32
    %2 = arith.andi %0, %1 : i1
    %3 = arith.extui %2 : i1 to i32
    %c0_i32_1 = arith.constant 0 : i32
    %4 = arith.cmpi ne, %3, %c0_i32_1 : i32
    scf.if %4 {
      %cst_15 = arith.constant 0.000000e+00 : f32
      %30 = vector.broadcast %cst_15 : f32 to vector<1x8x256xf32>
      %c0_16 = arith.constant 0 : index
      %c0_17 = arith.constant 0 : index
      %c0_18 = arith.constant 0 : index
      %31 = vector.load %arg5[%c0_16, %c0_17, %c0_18] : memref<1x8x256xf32, #tpu.memory_space<vmem>>, vector<1x8x256xf32>
      tpu.vector_store %arg5[%c0_16, %c0_17, %c0_18], %30 {strides = array<i32>} : memref<1x8x256xf32, #tpu.memory_space<vmem>>, vector<1x8x256xf32>,
    } else {
    }
    %c0 = arith.constant 0 : index
    %c0_2 = arith.constant 0 : index
    %5 = vector.load %arg3[%c0, %c0_2] : memref<8x256xf32, #tpu.memory_space<vmem>>, vector<8x256xf32>
    %c0_3 = arith.constant 0 : index
    %c0_4 = arith.constant 0 : index
    %6 = vector.load %arg4[%c0_3, %c0_4] : memref<8x256xf32, #tpu.memory_space<vmem>>, vector<8x256xf32>
    %7 = tpu.iota {dimensions = array<i32: 1>} : vector<8x256xi32>
    %c256_i32 = arith.constant 256 : i32
    %8 = arith.muli %arg2, %c256_i32 : i32
    %9 = vector.broadcast %8 : i32 to vector<8x256xi32>
    %10 = arith.addi %9, %7 : vector<8x256xi32>
    %c200_i32 = arith.constant 200 : i32
    %11 = vector.broadcast %c200_i32 : i32 to vector<8x256xi32>
    %12 = arith.cmpi slt, %10, %11 : vector<8x256xi32>
    %cst = arith.constant 0.000000e+00 : f32
    %13 = vector.broadcast %cst : f32 to vector<8x256xf32>
    %14 = arith.select %12, %6, %13 : vector<8x256xi1>, vector<8x256xf32>
    %cst_5 = arith.constant 0.000000e+00 : f32
    %15 = vector.broadcast %cst_5 : f32 to vector<8x256xf32>
    %16 = arith.select %12, %5, %15 : vector<8x256xi1>, vector<8x256xf32>
    %cst_6 = arith.constant 0.000000e+00 : f32
    %17 = vector.broadcast %cst_6 : f32 to vector<8x256xf32>
    %18 = arith.cmpf ogt, %14, %17 : vector<8x256xf32>
    %cst_7 = arith.constant 1.000000e+00 : f32
    %19 = vector.broadcast %cst_7 : f32 to vector<8x256xf32>
    %20 = arith.select %18, %14, %19 : vector<8x256xi1>, vector<8x256xf32>
    %21 = math.log %20 : vector<8x256xf32>
    %22 = arith.subf %21, %16 : vector<8x256xf32>
    %23 = arith.mulf %14, %22 : vector<8x256xf32>
    %24 = vector.shape_cast %23 : vector<8x256xf32> to vector<1x8x256xf32>
    %cst_8 = arith.constant dense<0.000000e+00> : vector<8x256xf32>
    %25 = vector.multi_reduction <add>, %24, %cst_8 [0] : vector<1x8x256xf32> to vector<8x256xf32>
    %c0_9 = arith.constant 0 : index
    %c0_10 = arith.constant 0 : index
    %c0_11 = arith.constant 0 : index
    %26 = vector.load %arg5[%c0_9, %c0_10, %c0_11] : memref<1x8x256xf32, #tpu.memory_space<vmem>>, vector<1x8x256xf32>
    %27 = vector.shape_cast %25 : vector<8x256xf32> to vector<1x8x256xf32>
    %28 = arith.addf %26, %27 : vector<1x8x256xf32>
    %c0_12 = arith.constant 0 : index
    %c0_13 = arith.constant 0 : index
    %c0_14 = arith.constant 0 : index
    %29 = vector.load %arg5[%c0_12, %c0_13, %c0_14] : memref<1x8x256xf32, #tpu.memory_space<vmem>>, vector<1x8x256xf32>
    tpu.vector_store %arg5[%c0_12, %c0_13, %c0_14], %28 {strides = array<i32>} : memref<1x8x256xf32, #tpu.memory_space<vmem>>, vector<1x8x256xf32>,
    return
  }
  func.func @transform_0(%arg0: i32, %arg1: i32, %arg2: i32) -> (i32, i32) {
    %c1_i32 = arith.constant 1 : i32
    %0 = arith.muli %arg0, %c1_i32 : i32
    %1 = arith.addi %0, %arg1 : i32
    %c0_i32 = arith.constant 0 : i32
    return %1, %arg2 : i32, i32
  }
  func.func @transform_1(%arg0: i32, %arg1: i32, %arg2: i32) -> (i32, i32) {
    %c1_i32 = arith.constant 1 : i32
    %0 = arith.muli %arg0, %c1_i32 : i32
    %1 = arith.addi %0, %arg1 : i32
    %c0_i32 = arith.constant 0 : i32
    return %1, %arg2 : i32, i32
  }
  func.func @transform_2(%arg0: i32, %arg1: i32, %arg2: i32) -> (i32, i32, i32) {
    %c0_i32 = arith.constant 0 : i32
    %c0_i32_0 = arith.constant 0 : i32
    %c0_i32_1 = arith.constant 0 : i32
    return %arg0, %c0_i32, %c0_i32_0 : i32, i32, i32
  }
}

</mosaic_0001>

<llo_original>
// kernel: tpu_custom_call.1
$region0: #{tpu_custom_call.1}
  #allocation0 [shape = 'u32[]', space=smem, size = 0x4, offset = 0x4, fixed_abs, tag = 'smem constant byte address 0x4 - core index']
  #allocation1 [shape = 'u32[144,128]{1,0:T(1,128)}', space=vmem, size = 0x12000, scoped, tag = 'internal scratch']
  %s0 = inlined_call_operand.hbm [shape: f32[8,200], index: 0, kind: input, shape index: {}]
  %s1 = inlined_call_operand.hbm [shape: f32[8,200], index: 1, kind: input, shape index: {}]
  %s2 = inlined_call_operand.hbm [shape: f32[1,8,256], index: 2, kind: output, shape index: {}]
  %s3 = sld [smem:[#allocation0]]
  $region30: #{tpu_custom_call.1} parent=0
    _
  %s5 = ssub.s32 1, %s3
  %s6 = scalar_select 0, %s5, %s3
  $region1: #{tpu_custom_call.1} parent=0
    #allocation2 [shape = 'u8[8192]{0}', space=vmem, size = 0x2000, scoped, tag = 'input window, operand 0, single buffered']
    #allocation3 [shape = 's32[1]{0}', space=sflag, size = 0x4, scoped, tag = 'scoped memory for tpu_custom_call.1']
    #allocation4 [shape = 's32[1]{0}', space=sflag, size = 0x4, scoped, tag = 'scoped memory for tpu_custom_call.1']
    #allocation5 [shape = 'u8[8192]{0}', space=vmem, size = 0x2000, scoped, tag = 'input window, operand 1, single buffered']
    #allocation6 [shape = 's32[1]{0}', space=sflag, size = 0x4, scoped, tag = 'scoped memory for tpu_custom_call.1']
    #allocation7 [shape = 'u8[8192]{0}', space=vmem, size = 0x2000, scoped, tag = 'output window, operand 0, single buffered']
    %7 = vsyncpa [#allocation3], 0
    %8 = vsyncpa [#allocation6], 0
    %9 = vsyncpa [#allocation4], 0
    // Predicated region
    $region2: #{tpu_custom_call.1} parent=1 // pred_check
      _
    $region3: #{tpu_custom_call.1} parent=1 // pred_check_branch
      %11 = sbr.rel (0) target = $region5
    $region4: #{tpu_custom_call.1} parent=1 // pred_region
      %s12 = sadd.s32 0, 0
      %s14 = ssub.s32 256, 256
      %15 = vsyncadd [#allocation3], %s14
      %s16 = smul.addr %s12, 2
      %s17 = smul.addr %s16, 128
      %s18 = scalar_lea.hbm %s0, %s17
      %s20 = sshll.u32 [#allocation2], 4
      %s21 = int_to_ptr.vmem [resolvable:$true] %s20
      %23 = dma.hbm_to_vmem [thread:$0]  %s18, 256, %s21, [#allocation3]
    $region5: #{tpu_custom_call.1} parent=1 // pred_fallthru
      _
    // Predicated region
    $region6: #{tpu_custom_call.1} parent=1 // pred_check
      _
    $region7: #{tpu_custom_call.1} parent=1 // pred_check_branch
      %25 = sbr.rel (0) target = $region9
    $region8: #{tpu_custom_call.1} parent=1 // pred_region
      %s26 = sadd.s32 0, 0
      %s28 = ssub.s32 256, 256
      %29 = vsyncadd [#allocation6], %s28
      %s30 = smul.addr %s26, 2
      %s31 = smul.addr %s30, 128
      %s32 = scalar_lea.hbm %s1, %s31
      %s34 = sshll.u32 [#allocation5], 4
      %s35 = int_to_ptr.vmem [resolvable:$true] %s34
      %37 = dma.hbm_to_vmem [thread:$0]  %s32, 256, %s35, [#allocation6]
    $region9: #{tpu_custom_call.1} parent=1 // pred_fallthru
      _
    // Predicated region
    $region10: #{tpu_custom_call.1} parent=1 // pred_check
      _
    $region11: #{tpu_custom_call.1} parent=1 // pred_check_branch
      %39 = sbr.rel (0) target = $region13
    $region12: #{tpu_custom_call.1} parent=1 // pred_region
      %40 = dma.done [#allocation3], 256
    $region13: #{tpu_custom_call.1} parent=1 // pred_fallthru
      _
    // Predicated region
    $region14: #{tpu_custom_call.1} parent=1 // pred_check
      _
    $region15: #{tpu_custom_call.1} parent=1 // pred_check_branch
      %42 = sbr.rel (0) target = $region17
    $region16: #{tpu_custom_call.1} parent=1 // pred_region
      %43 = dma.done [#allocation6], 256
    $region17: #{tpu_custom_call.1} parent=1 // pred_fallthru
      _
    %s44 = sadd.s32 0, 0
    %s45 = sadd.s32 0, 0
    %p46 = scmp.eq.s32.totalorder 0, 0
    %p47 = scmp.eq.s32.totalorder 0, 0
    %p48 = pnand %p46, %p47
    %p49 = pneg %p48
    // Predicated region
    $region18: #{tpu_custom_call.1} parent=1 // pred_check
      _
    $region19: #{tpu_custom_call.1} parent=1 // pred_check_branch
      %51 = sbr.rel (%p48) target = $region21
    $region20: #{tpu_custom_call.1} parent=1 // pred_region
      %52 = vst [vmem:[#allocation7] sm:$0xff] 0.0
      %53 = vst [vmem:[#allocation7 + $0x8] sm:$0xff] 0.0
    $region21: #{tpu_custom_call.1} parent=1 // pred_fallthru
      _
    %v54 = vld [vmem:[#allocation2] sm:$0xff]
    %v55 = vld [vmem:[#allocation2 + $0x8] sm:$0xff]
    %v56 = vld [vmem:[#allocation5] sm:$0xff]
    %v57 = vld [vmem:[#allocation5 + $0x8] sm:$0xff]
    %v58 = vlaneseq
    %v59 = vand.u32 %v58, 127
    %v60 = vadd.s32 %v59, 128
    %s61 = smul.u32 0, 256
    %v62 = vstv %s61
    %v63 = vadd.s32 %v62, %v59
    %v64 = vadd.s32 %v62, %v60
    %vm65 = vcmp.lt.s32.totalorder %v63, 200
    %vm66 = vcmp.lt.s32.totalorder %v64, 200
    %v67 = vsel %vm65, %v56, 0.0
    %v68 = vsel %vm66, %v57, 0.0
    %v69 = vsel %vm65, %v54, 0.0
    %v70 = vsel %vm66, %v55, 0.0
    %vm71 = vcmp.gt.f32.partialorder %v67, 0.0
    %vm72 = vcmp.gt.f32.partialorder %v68, 0.0
    %v73 = vsel %vm71, %v67, 1.0
    %v74 = vsel %vm72, %v68, 1.0
    %v75 = vlog2.pop %v73
    %v76 = vmul.f32 %v75, 0.6931472
    %v77 = vlog2.pop %v74
    %v78 = vmul.f32 %v77, 0.6931472
    %v79 = vsub.f32 %v76, %v69
    %v80 = vsub.f32 %v78, %v70
    %v81 = vmul.f32 %v67, %v79
    %v82 = vmul.f32 %v68, %v80
    %v83 = vadd.f32 %v81, 0.0
    %v84 = vadd.f32 %v82, 0.0
    %v85 = vld [vmem:[#allocation7] sm:$0xff]
    %v86 = vld [vmem:[#allocation7 + $0x8] sm:$0xff]
    %v87 = vadd.f32 %v85, %v83
    %v88 = vadd.f32 %v86, %v84
    %89 = vst [vmem:[#allocation7] sm:$0xff] %v87
    %90 = vst [vmem:[#allocation7 + $0x8] sm:$0xff] %v88
    // Predicated region
    $region22: #{tpu_custom_call.1} parent=1 // pred_check
      _
    $region23: #{tpu_custom_call.1} parent=1 // pred_check_branch
      %92 = sbr.rel (0) target = $region25
    $region24: #{tpu_custom_call.1} parent=1 // pred_region
      %s94 = ssub.s32 256, 256
      %95 = vsyncadd [#allocation4], %s94
      %s97 = sshll.u32 [#allocation7], 4
      %s98 = int_to_ptr.vmem [resolvable:$true] %s97
      %100 = dma.vmem_to_hbm [thread:$0]  %s98, 256, %s2, [#allocation4]
    $region25: #{tpu_custom_call.1} parent=1 // pred_fallthru
      _
    // Predicated region
    $region26: #{tpu_custom_call.1} parent=1 // pred_check
      _
    $region27: #{tpu_custom_call.1} parent=1 // pred_check_branch
      %102 = sbr.rel (0) target = $region29
    $region28: #{tpu_custom_call.1} parent=1 // pred_region
      %103 = dma.done [#allocation4], 256
    $region29: #{tpu_custom_call.1} parent=1 // pred_fallthru
      _
    %104 = vsyncpa [#allocation3], 1
    %105 = vsyncpa [#allocation6], 1
    %106 = vsyncpa [#allocation4], 1

</llo_original>
